<compile_context>
chip_gen: v5e
topology: v5e:2x2
jax: 0.10.0
libtpu: 0.0.40
codegen_flags: <defaults>
</compile_context>

<pallas_src>
import functools

import jax
import jax.numpy as jnp
from jax.experimental import pallas as pl
from jax.experimental.pallas import tpu as pltpu


def fam_kernel(coeff_ref, mask_ref, x_ref, o_ref, *, w):
    # coeff_ref: SMEM f32[2]      = (para1 - para4, (para3 + para4) / 9)
    # mask_ref:  VMEM f32[4, HW]  rows: (w != 0), (w != W-1), (h != 0), (h != H-1)
    #                             for flattened spatial index f = h*W + w
    # x_ref:     VMEM [T, HW]     T fused (b, c) planes, spatially flattened (lane-dense)
    # o_ref:     VMEM [T, HW]
    hw = o_ref.shape[1]
    x = x_ref[...].astype(jnp.float32)
    m = mask_ref[...]

    # Separable 3x3 sum with implicit zero padding, done on the flat lane axis.
    # Horizontal 3-tap: neighbors live at flat offsets +-1; row-crossing / wrap-around
    # contributions are zeroed by the w-boundary masks.
    left = pltpu.roll(x, shift=1, axis=1) * m[0:1, :]
    right = pltpu.roll(x, shift=hw - 1, axis=1) * m[1:2, :]
    row = left + x + right

    # Vertical 3-tap: neighbors live at flat offsets +-W; wrap-around rows zeroed by
    # the h-boundary masks.
    up = pltpu.roll(row, shift=w, axis=1) * m[2:3, :]
    down = pltpu.roll(row, shift=hw - w, axis=1) * m[3:4, :]
    s = up + row + down

    a = coeff_ref[0]  # para1 - para4
    b = coeff_ref[1]  # (para3 + para4) / 9
    o_ref[...] = (x * a + s * b).astype(o_ref.dtype)


def fam_forward(x, params):
    """x: (B, C, H, W), params: (4,) = (para1, para2, para3, para4)."""
    B, C, H, W = x.shape
    BC = B * C
    HW = H * W

    # Free reshape (contiguous leading dims collapse, H*W becomes the lane axis).
    xr = x.reshape(BC, HW)

    # x_g == x, so the (x_g - x)*para2 term is identically zero; fold the rest
    # (including the 1/9 of the average pool) into two scalars.
    coeff = jnp.stack(
        [params[0] - params[3], (params[2] + params[3]) / 9.0]
    ).astype(jnp.float32)

    # Boundary masks for the flattened spatial axis (computed once, tiny).
    idx = jnp.arange(HW, dtype=jnp.int32)
    wpos = idx % W
    hpos = idx // W
    masks = jnp.stack(
        [(wpos != 0), (wpos != W - 1), (hpos != 0), (hpos != H - 1)]
    ).astype(jnp.float32)  # (4, HW)

    # Fuse as many (b, c) planes per grid step as ~2 MiB allows so per-step overhead
    # is amortized while double-buffered in+out stays under the default scoped VMEM
    # on every TPU generation (v7x has only 64 MiB physical VMEM).
    bytes_per_plane = HW * jnp.dtype(x.dtype).itemsize
    target_planes = max(1, (2 << 20) // max(1, bytes_per_plane))
    if target_planes >= BC:
        tile = BC
    else:
        tile = max(8, (target_planes // 8) * 8)  # keep sublane dim a multiple of 8
        tile = min(tile, BC)
    grid = (pl.cdiv(BC, tile),)

    kernel = functools.partial(fam_kernel, w=W)
    out = pl.pallas_call(
        kernel,
        out_shape=jax.ShapeDtypeStruct((BC, HW), x.dtype),
        grid=grid,
        in_specs=[
            pl.BlockSpec(memory_space=pltpu.MemorySpace.SMEM),   # folded scalars
            pl.BlockSpec((4, HW), lambda i: (0, 0)),             # boundary masks (resident)
            pl.BlockSpec((tile, HW), lambda i: (i, 0)),          # fused (b,c) planes
        ],
        out_specs=pl.BlockSpec((tile, HW), lambda i: (i, 0)),
        compiler_params=pltpu.CompilerParams(
            dimension_semantics=("parallel",)),                  # shards across v7x's 2 TCs
    )(coeff, masks, xr)
    return out.reshape(B, C, H, W)


def fam_reference(x, params):
    """Pure-JAX reference matching the PyTorch forward (all four terms, un-folded)."""
    p1, p2, p3, p4 = params[0], params[1], params[2], params[3]
    B, C, H, W = x.shape
    xp = jnp.pad(x, ((0, 0), (0, 0), (1, 1), (1, 1)))
    acc = jnp.zeros_like(x)
    for dh in range(3):
        for dw in range(3):
            acc = acc + xp[:, :, dh:dh + H, dw:dw + W]
    x_a = acc / 9.0
    x_g = x
    return x_g * p1 + (x_g - x) * p2 + x_a * p3 + (x_a - x) * p4


if __name__ == "__main__":
    key = jax.random.PRNGKey(0)
    B, C, H, W = 2, 4, 16, 16
    kx, kp = jax.random.split(key)
    x = jax.random.normal(kx, (B, C, H, W), dtype=jnp.float32)

    # Module init values: para1 = 1, para2 = 0, para3 = 1, para4 = 0.
    params_init = jnp.array([1.0, 0.0, 1.0, 0.0], dtype=jnp.float32)
    # Also exercise non-trivial parameters to validate the scalar folding.
    params_rand = jax.random.normal(kp, (4,), dtype=jnp.float32)

    for params in (params_init, params_rand):
        out = jax.block_until_ready(fam_forward(x, params))
        ref = fam_reference(x, params)
        assert out.shape == (B, C, H, W)
        assert jnp.allclose(out, ref, atol=1e-5, rtol=1e-5), float(
            jnp.max(jnp.abs(out - ref)))

    print("KERNEL_OK")
</pallas_src>

<mosaic_0001>
module attributes {stable_mosaic.version = 11 : i64} {
  func.func @fam_kernel(%arg0: i32, %arg1: memref<2xf32, #tpu.memory_space<smem>>, %arg2: memref<4x256xf32, #tpu.memory_space<vmem>>, %arg3: memref<8x256xf32, #tpu.memory_space<vmem>>, %arg4: memref<8x256xf32, #tpu.memory_space<vmem>>) attributes {dimension_semantics = [#tpu.dimension_semantics<parallel>], iteration_bounds = array<i64: 1>, scalar_prefetch = 0 : i64, scratch_operands = 0 : i64, tpu.core_type = #tpu.core_type<tc>, window_params = [{transform_indices = @transform_0, window_bounds = array<i64: 2>}, {pipeline_mode = #tpu.pipeline_mode<synchronous>, transform_indices = @transform_1, window_bounds = array<i64: 4, 256>}, {transform_indices = @transform_2, window_bounds = array<i64: 8, 256>}, {transform_indices = @transform_3, window_bounds = array<i64: 8, 256>}]} {
    %c0 = arith.constant 0 : index
    %c0_0 = arith.constant 0 : index
    %0 = vector.load %arg3[%c0, %c0_0] : memref<8x256xf32, #tpu.memory_space<vmem>>, vector<8x256xf32>
    %c0_1 = arith.constant 0 : index
    %c0_2 = arith.constant 0 : index
    %1 = vector.load %arg2[%c0_1, %c0_2] : memref<4x256xf32, #tpu.memory_space<vmem>>, vector<4x256xf32>
    %c1_i32 = arith.constant 1 : i32
    %2 = tpu.dynamic_rotate %0 by %c1_i32 dim 1 : vector<8x256xf32>, i32 -> vector<8x256xf32>
    %3 = vector.extract_strided_slice %1 {offsets = [0, 0], sizes = [1, 256], strides = [1, 1]} : vector<4x256xf32> to vector<1x256xf32>
    %4 = vector.broadcast %3 : vector<1x256xf32> to vector<8x256xf32>
    %5 = arith.mulf %2, %4 : vector<8x256xf32>
    %c255_i32 = arith.constant 255 : i32
    %6 = tpu.dynamic_rotate %0 by %c255_i32 dim 1 : vector<8x256xf32>, i32 -> vector<8x256xf32>
    %7 = vector.extract_strided_slice %1 {offsets = [1, 0], sizes = [1, 256], strides = [1, 1]} : vector<4x256xf32> to vector<1x256xf32>
    %8 = vector.broadcast %7 : vector<1x256xf32> to vector<8x256xf32>
    %9 = arith.mulf %6, %8 : vector<8x256xf32>
    %10 = arith.addf %5, %0 : vector<8x256xf32>
    %11 = arith.addf %10, %9 : vector<8x256xf32>
    %c16_i32 = arith.constant 16 : i32
    %12 = tpu.dynamic_rotate %11 by %c16_i32 dim 1 : vector<8x256xf32>, i32 -> vector<8x256xf32>
    %13 = vector.extract_strided_slice %1 {offsets = [2, 0], sizes = [1, 256], strides = [1, 1]} : vector<4x256xf32> to vector<1x256xf32>
    %14 = vector.broadcast %13 : vector<1x256xf32> to vector<8x256xf32>
    %15 = arith.mulf %12, %14 : vector<8x256xf32>
    %c240_i32 = arith.constant 240 : i32
    %16 = tpu.dynamic_rotate %11 by %c240_i32 dim 1 : vector<8x256xf32>, i32 -> vector<8x256xf32>
    %17 = vector.extract_strided_slice %1 {offsets = [3, 0], sizes = [1, 256], strides = [1, 1]} : vector<4x256xf32> to vector<1x256xf32>
    %18 = vector.broadcast %17 : vector<1x256xf32> to vector<8x256xf32>
    %19 = arith.mulf %16, %18 : vector<8x256xf32>
    %20 = arith.addf %15, %11 : vector<8x256xf32>
    %21 = arith.addf %20, %19 : vector<8x256xf32>
    %c0_3 = arith.constant 0 : index
    %22 = memref.load %arg1[%c0_3] : memref<2xf32, #tpu.memory_space<smem>>
    %c1 = arith.constant 1 : index
    %23 = memref.load %arg1[%c1] : memref<2xf32, #tpu.memory_space<smem>>
    %24 = vector.broadcast %22 : f32 to vector<8x256xf32>
    %25 = arith.mulf %0, %24 : vector<8x256xf32>
    %26 = vector.broadcast %23 : f32 to vector<8x256xf32>
    %27 = arith.mulf %21, %26 : vector<8x256xf32>
    %28 = arith.addf %25, %27 : vector<8x256xf32>
    %c0_4 = arith.constant 0 : index
    %c0_5 = arith.constant 0 : index
    %29 = vector.load %arg4[%c0_4, %c0_5] : memref<8x256xf32, #tpu.memory_space<vmem>>, vector<8x256xf32>
    tpu.vector_store %arg4[%c0_4, %c0_5], %28 {strides = array<i32>} : memref<8x256xf32, #tpu.memory_space<vmem>>, vector<8x256xf32>,
    return
  }
  func.func @transform_0(%arg0: i32) -> i32 {
    %c0_i32 = arith.constant 0 : i32
    %c0_i32_0 = arith.constant 0 : i32
    return %c0_i32 : i32
  }
  func.func @transform_1(%arg0: i32) -> (i32, i32) {
    %c0_i32 = arith.constant 0 : i32
    %c0_i32_0 = arith.constant 0 : i32
    %c0_i32_1 = arith.constant 0 : i32
    return %c0_i32, %c0_i32_0 : i32, i32
  }
  func.func @transform_2(%arg0: i32) -> (i32, i32) {
    %c0_i32 = arith.constant 0 : i32
    %c0_i32_0 = arith.constant 0 : i32
    return %arg0, %c0_i32 : i32, i32
  }
  func.func @transform_3(%arg0: i32) -> (i32, i32) {
    %c0_i32 = arith.constant 0 : i32
    %c0_i32_0 = arith.constant 0 : i32
    return %arg0, %c0_i32 : i32, i32
  }
}

</mosaic_0001>

<llo_original>
// kernel: tpu_custom_call.1
$region0: #{tpu_custom_call.1}
  #allocation0 [shape = 'u32[]', space=smem, size = 0x4, offset = 0x4, fixed_abs, tag = 'smem constant byte address 0x4 - core index']
  #allocation1 [shape = 'u32[72,128]{1,0:T(1,128)}', space=vmem, size = 0x9000, scoped, tag = 'internal scratch']
  %s0 = inlined_call_operand.hbm [shape: f32[2], index: 0, kind: input, shape index: {}]
  %s1 = inlined_call_operand.hbm [shape: f32[4,256], index: 1, kind: input, shape index: {}]
  %s2 = inlined_call_operand.hbm [shape: f32[8,256], index: 2, kind: input, shape index: {}]
  %s3 = inlined_call_operand.hbm [shape: f32[8,256], index: 3, kind: output, shape index: {}]
  %s4 = sld [smem:[#allocation0]]
  $region34: #{tpu_custom_call.1} parent=0
    _
  %s6 = ssub.s32 1, %s4
  %s7 = scalar_select 0, %s6, %s4
  $region1: #{tpu_custom_call.1} parent=0
    #allocation2 [shape = 'u8[512]{0}', space=smem, size = 0x200, scoped, tag = 'input window, operand 0, single buffered']
    #allocation3 [shape = 's32[1]{0}', space=sflag, size = 0x4, scoped, tag = 'scoped memory for tpu_custom_call.1']
    #allocation4 [shape = 's32[1]{0}', space=sflag, size = 0x4, scoped, tag = 'scoped memory for tpu_custom_call.1']
    #allocation5 [shape = 's32[1]{0}', space=sflag, size = 0x4, scoped, tag = 'scoped memory for tpu_custom_call.1']
    #allocation6 [shape = 'u8[4096]{0}', space=vmem, size = 0x1000, scoped, tag = 'input window, operand 1, single buffered']
    #allocation7 [shape = 'u8[8192]{0}', space=vmem, size = 0x2000, scoped, tag = 'input window, operand 2, single buffered']
    #allocation8 [shape = 's32[1]{0}', space=sflag, size = 0x4, scoped, tag = 'scoped memory for tpu_custom_call.1']
    #allocation9 [shape = 'u8[8192]{0}', space=vmem, size = 0x2000, scoped, tag = 'output window, operand 0, single buffered']
    %8 = vsyncpa [#allocation5], 0
    %9 = vsyncpa [#allocation3], 0
    %10 = vsyncpa [#allocation8], 0
    %11 = vsyncpa [#allocation4], 0
    // Predicated region
    $region2: #{tpu_custom_call.1} parent=1 // pred_check
      _
    $region3: #{tpu_custom_call.1} parent=1 // pred_check_branch
      %13 = sbr.rel (0) target = $region5
    $region4: #{tpu_custom_call.1} parent=1 // pred_region
      %15 = vsyncadd [#allocation5], 0
      %s17 = sshll.u32 %s0, 4
      %s18 = int_to_ptr.hbm [resolvable:$true] %s17
      %20 = dma.hbm_to_smem %s18, 16, [#allocation2], [#allocation5]
    $region5: #{tpu_custom_call.1} parent=1 // pred_fallthru
      _
    // Predicated region
    $region6: #{tpu_custom_call.1} parent=1 // pred_check
      _
    $region7: #{tpu_custom_call.1} parent=1 // pred_check_branch
      %22 = sbr.rel (0) target = $region9
    $region8: #{tpu_custom_call.1} parent=1 // pred_region
      %24 = vsyncadd [#allocation3], 0
      %s26 = sshll.u32 %s1, 4
      %s27 = int_to_ptr.hbm [resolvable:$true] %s26
      %s28 = sshll.u32 [#allocation6], 4
      %s29 = int_to_ptr.vmem [resolvable:$true] %s28
      %31 = dma.hbm_to_vmem [thread:$0]  %s27, 128, %s29, [#allocation3]
    $region9: #{tpu_custom_call.1} parent=1 // pred_fallthru
      _
    // Predicated region
    $region10: #{tpu_custom_call.1} parent=1 // pred_check
      _
    $region11: #{tpu_custom_call.1} parent=1 // pred_check_branch
      %33 = sbr.rel (0) target = $region13
    $region12: #{tpu_custom_call.1} parent=1 // pred_region
      %35 = vsyncadd [#allocation8], 0
      %s37 = sshll.u32 %s2, 4
      %s38 = int_to_ptr.hbm [resolvable:$true] %s37
      %s39 = sshll.u32 [#allocation7], 4
      %s40 = int_to_ptr.vmem [resolvable:$true] %s39
      %42 = dma.hbm_to_vmem [thread:$0]  %s38, 256, %s40, [#allocation8]
    $region13: #{tpu_custom_call.1} parent=1 // pred_fallthru
      _
    // Predicated region
    $region14: #{tpu_custom_call.1} parent=1 // pred_check
      _
    $region15: #{tpu_custom_call.1} parent=1 // pred_check_branch
      %44 = sbr.rel (0) target = $region17
    $region16: #{tpu_custom_call.1} parent=1 // pred_region
      %46 = dma.done [#allocation5], 16
    $region17: #{tpu_custom_call.1} parent=1 // pred_fallthru
      _
    // Predicated region
    $region18: #{tpu_custom_call.1} parent=1 // pred_check
      _
    $region19: #{tpu_custom_call.1} parent=1 // pred_check_branch
      %48 = sbr.rel (0) target = $region21
    $region20: #{tpu_custom_call.1} parent=1 // pred_region
      %50 = dma.done [#allocation3], 128
    $region21: #{tpu_custom_call.1} parent=1 // pred_fallthru
      _
    // Predicated region
    $region22: #{tpu_custom_call.1} parent=1 // pred_check
      _
    $region23: #{tpu_custom_call.1} parent=1 // pred_check_branch
      %52 = sbr.rel (0) target = $region25
    $region24: #{tpu_custom_call.1} parent=1 // pred_region
      %54 = dma.done [#allocation8], 256
    $region25: #{tpu_custom_call.1} parent=1 // pred_fallthru
      _
    %55 = sfence
    %v56 = vld [vmem:[#allocation7] sm:$0xff]
    %v57 = vld [vmem:[#allocation7 + $0x8] sm:$0xff]
    %v58 = vld [vmem:[#allocation6] sm:$0xff]
    %59 = vrot.lane.b32.xlu0 %v56, 1
    %v60 = vpop.permute.xlu0 %59
    %61 = vrot.lane.b32.xlu0 %v57, 1
    %v62 = vpop.permute.xlu0 %61
    %v63 = vlaneseq
    %v64 = vand.u32 %v63, 127
    %vm65 = vcmp.lt.s32.totalorder %v64, 1
    %v66 = vsel %vm65, %v60, %v62
    %v67 = vsel %vm65, %v62, %v60
    %v69 = vperm.slane %v58, 0
    %v70 = vperm.slane %v58, 4
    %v73 = vperm.slane %v69, 0
    %v74 = vperm.slane %v70, 0
    %v75 = vmul.f32 %v67, %v73
    %v76 = vmul.f32 %v66, %v74
    %77 = vrot.lane.b32.xlu0 %v56, 127
    %v78 = vpop.permute.xlu0 %77
    %79 = vrot.lane.b32.xlu0 %v57, 127
    %v80 = vpop.permute.xlu0 %79
    %vm81 = vcmp.lt.s32.totalorder %v64, 127
    %v82 = vsel %vm81, %v78, %v80
    %v83 = vsel %vm81, %v80, %v78
    %v84 = vperm.slane %v58, 1
    %v85 = vperm.slane %v58, 5
    %v88 = vperm.slane %v84, 1
    %v89 = vperm.slane %v85, 1
    %v90 = vmul.f32 %v82, %v88
    %v91 = vmul.f32 %v83, %v89
    %v92 = vadd.f32 %v75, %v56
    %v93 = vadd.f32 %v76, %v57
    %v94 = vadd.f32 %v92, %v90
    %v95 = vadd.f32 %v93, %v91
    %96 = vrot.lane.b32.xlu0 %v94, 16
    %v97 = vpop.permute.xlu0 %96
    %98 = vrot.lane.b32.xlu0 %v95, 16
    %v99 = vpop.permute.xlu0 %98
    %vm100 = vcmp.lt.s32.totalorder %v64, 16
    %v101 = vsel %vm100, %v97, %v99
    %v102 = vsel %vm100, %v99, %v97
    %v103 = vperm.slane %v58, 2
    %v104 = vperm.slane %v58, 6
    %v107 = vperm.slane %v103, 2
    %v108 = vperm.slane %v104, 2
    %v109 = vmul.f32 %v102, %v107
    %v110 = vmul.f32 %v101, %v108
    %111 = vrot.lane.b32.xlu0 %v94, 112
    %v112 = vpop.permute.xlu0 %111
    %113 = vrot.lane.b32.xlu0 %v95, 112
    %v114 = vpop.permute.xlu0 %113
    %vm115 = vcmp.lt.s32.totalorder %v64, 112
    %v116 = vsel %vm115, %v112, %v114
    %v117 = vsel %vm115, %v114, %v112
    %v118 = vperm.slane %v58, 3
    %v119 = vperm.slane %v58, 7
    %v122 = vperm.slane %v118, 3
    %v123 = vperm.slane %v119, 3
    %v124 = vmul.f32 %v116, %v122
    %v125 = vmul.f32 %v117, %v123
    %v126 = vadd.f32 %v109, %v94
    %v127 = vadd.f32 %v110, %v95
    %v128 = vadd.f32 %v126, %v124
    %v129 = vadd.f32 %v127, %v125
    %s130 = sld [smem:[#allocation2]]
    %s131 = sld [smem:[#allocation2 + $0x1]]
    %v132 = vstv %s130
    %v133 = vmul.f32 %v56, %v132
    %v134 = vmul.f32 %v57, %v132
    %v135 = vstv %s131
    %v136 = vmul.f32 %v128, %v135
    %v137 = vmul.f32 %v129, %v135
    %v138 = vadd.f32 %v133, %v136
    %v139 = vadd.f32 %v134, %v137
    %140 = vst [vmem:[#allocation9] sm:$0xff] %v138
    %141 = vst [vmem:[#allocation9 + $0x8] sm:$0xff] %v139
    // Predicated region
    $region26: #{tpu_custom_call.1} parent=1 // pred_check
      _
    $region27: #{tpu_custom_call.1} parent=1 // pred_check_branch
      %143 = sbr.rel (0) target = $region29
    $region28: #{tpu_custom_call.1} parent=1 // pred_region
      %145 = vsyncadd [#allocation4], 0
      %s147 = sshll.u32 [#allocation9], 4
      %s148 = int_to_ptr.vmem [resolvable:$true] %s147
      %s149 = sshll.u32 %s3, 4
      %s150 = int_to_ptr.hbm [resolvable:$true] %s149
      %152 = dma.vmem_to_hbm [thread:$0]  %s148, 256, %s150, [#allocation4]
    $region29: #{tpu_custom_call.1} parent=1 // pred_fallthru
      _
    // Predicated region
    $region30: #{tpu_custom_call.1} parent=1 // pred_check
      _
    $region31: #{tpu_custom_call.1} parent=1 // pred_check_branch
      %154 = sbr.rel (0) target = $region33
    $region32: #{tpu_custom_call.1} parent=1 // pred_region
      %156 = dma.done [#allocation4], 256
    $region33: #{tpu_custom_call.1} parent=1 // pred_fallthru
      _
    %157 = vsyncpa [#allocation3], 1
    %158 = vsyncpa [#allocation8], 1
    %159 = vsyncpa [#allocation4], 1
    %160 = vsyncpa [#allocation5], 1

</llo_original>
